<compile_context>
chip_gen: v5e
topology: v5e:2x2
jax: 0.10.0
libtpu: 0.0.40
codegen_flags: <defaults>
</compile_context>

<pallas_src>
import jax
import jax.numpy as jnp
from jax import lax
from jax.experimental import pallas as pl
from jax.experimental.pallas import tpu as pltpu


# ----------------------------------------------------------------------------
# Kernel: one edge tile.
#   gauss  = exp(coeff * (dist - offsets)^2)                   [num_gauss, tE]
#   out^T  = Wf^T @ feat^T + Wg^T @ gauss + b                  [out_dim, tE]
#   store transpose(out^T)                                     [tE, out_dim]
# ----------------------------------------------------------------------------
def bond_embedding_kernel(coeff_ref, dist_ref, feat_ref, off_ref,
                          wf_ref, wg_ref, b_ref, out_ref):
    coeff = coeff_ref[0, 0]                                  # SMEM scalar

    # Gaussian smearing, edge-on-lanes so exp() runs on full vregs (EUP).
    d = dist_ref[...] - off_ref[...]                         # [num_gauss, tE]
    gauss = jnp.exp(coeff * d * d)

    # feat_ref is (tE, in_dim); contract on axis 1 of both operands so the
    # MXU result is lane-dense [out_dim, tE] without a wrapper-side feat.T.
    feat_part = lax.dot_general(
        wf_ref[...], feat_ref[...],
        dimension_numbers=(((1,), (1,)), ((), ())),
        preferred_element_type=jnp.float32)                  # [out_dim, tE]

    out_t = (feat_part
             + jnp.dot(wg_ref[...], gauss,
                       preferred_element_type=jnp.float32)
             + b_ref[...])                                   # [out_dim, tE]

    # XLU transpose -> contiguous (tE, out_dim) HBM block; no post-kernel
    # transpose pass over the output.
    out_ref[...] = jnp.transpose(out_t).astype(out_ref.dtype)


def bond_embedding(bond_feat, bond_index, pos_nodes,
                   offsets_1d, coeff, w_feat, w_gauss, bias_1d,
                   *, tile_e=2048):
    """Forward pass of BondEmbedding.

    bond_feat : [E, in_dim] f32
    bond_index: [2, E] int32
    pos_nodes : [N, 3] f32
    offsets_1d: [num_gauss] f32 (GaussianSmearing offsets)
    coeff     : float (GaussianSmearing coefficient)
    w_feat    : [in_dim, out_dim] f32     (Linear weight, feat part, = W.T slice)
    w_gauss   : [num_gauss, out_dim] f32  (Linear weight, gauss part, = W.T slice)
    bias_1d   : [out_dim] f32
    returns   : [E, out_dim] f32
    """
    E, in_dim = bond_feat.shape
    num_gauss = offsets_1d.shape[-1]
    out_dim = w_feat.shape[-1]

    if E == 0:
        return jnp.zeros((0, out_dim), dtype=jnp.float32)

    # --- Glue in plain JAX (fuses in XLA): endpoint gather + edge distance --
    # TODO(synk): the data-dependent gather pos_nodes[bond_index] has no clean
    # BlockSpec expression; it stays in XLA glue by design.
    diff = (jnp.take(pos_nodes, bond_index[0], axis=0)
            - jnp.take(pos_nodes, bond_index[1], axis=0))            # [E, 3]
    dist = jnp.sqrt(jnp.sum(diff * diff, axis=-1))                   # [E]

    # --- Edge-axis tiling: pad only to a multiple of 128, balance tiles -----
    e_aligned = pl.cdiv(E, 128) * 128
    tile_cap = max(128, (int(tile_e) // 128) * 128)
    n_tiles = pl.cdiv(e_aligned, tile_cap)
    if n_tiles == 1 and e_aligned >= 256:
        n_tiles = 2                      # give both v7x TensorCores a tile
    tile_e = pl.cdiv(pl.cdiv(e_aligned, n_tiles), 128) * 128
    e_pad = n_tiles * tile_e

    dist_t = dist.reshape(1, E)                                      # [1, E]
    feat = bond_feat                                                 # [E, in_dim]
    if e_pad != E:
        dist_t = jnp.pad(dist_t, ((0, 0), (0, e_pad - E)))
        feat = jnp.pad(feat, ((0, e_pad - E), (0, 0)))

    off_t = offsets_1d.reshape(num_gauss, 1)                         # [num_gauss, 1]
    wf_t = w_feat.T                                                  # [out_dim, in_dim]
    wg_t = w_gauss.T                                                 # [out_dim, num_gauss]
    bias_t = bias_1d.reshape(out_dim, 1)                             # [out_dim, 1]
    coeff_arr = jnp.full((1, 1), coeff, dtype=jnp.float32)

    # Explicit VMEM budget (lane/sublane padding + double buffering included)
    # so the kernel is portable across v5e/v6e/v7x scoped-VMEM defaults.
    lane = 128
    per_tile = 4 * tile_e * (8 + lane + lane)          # dist, feat, out blocks
    scratch = 4 * tile_e * (24 + out_dim + lane)       # gauss / acc / transpose
    consts = 4 * lane * (3 * out_dim + 2 * 8)
    vmem_limit = int(min(48 << 20,
                         max(8 << 20, 2 * per_tile + scratch + 2 * consts)))

    cost = pl.CostEstimate(
        flops=2 * e_pad * out_dim * (in_dim + num_gauss) + 6 * e_pad * num_gauss,
        transcendentals=e_pad * num_gauss,
        bytes_accessed=4 * (e_pad * (in_dim + 1 + out_dim)
                            + out_dim * (in_dim + num_gauss + 1) + num_gauss),
    )

    out = pl.pallas_call(
        bond_embedding_kernel,
        out_shape=jax.ShapeDtypeStruct((e_pad, out_dim), jnp.float32),
        grid=(n_tiles,),
        in_specs=[
            pl.BlockSpec((1, 1), lambda i: (0, 0),
                         memory_space=pltpu.MemorySpace.SMEM),        # coeff
            pl.BlockSpec((1, tile_e), lambda i: (0, i)),              # dist
            pl.BlockSpec((tile_e, in_dim), lambda i: (i, 0)),         # bond_feat
            pl.BlockSpec((num_gauss, 1), lambda i: (0, 0)),           # offsets
            pl.BlockSpec((out_dim, in_dim), lambda i: (0, 0)),        # Wf^T
            pl.BlockSpec((out_dim, num_gauss), lambda i: (0, 0)),     # Wg^T
            pl.BlockSpec((out_dim, 1), lambda i: (0, 0)),             # bias
        ],
        out_specs=pl.BlockSpec((tile_e, out_dim), lambda i: (i, 0)),
        compiler_params=pltpu.CompilerParams(
            dimension_semantics=("parallel",),
            vmem_limit_bytes=vmem_limit),
        cost_estimate=cost,
    )(coeff_arr, dist_t, feat, off_t, wf_t, wg_t, bias_t)

    return out[:E]                      # drop edge padding; already [E, out_dim]


# ----------------------------------------------------------------------------
# Pure-JAX reference (mirrors the PyTorch forward exactly)
# ----------------------------------------------------------------------------
def bond_embedding_ref(bond_feat, bond_index, pos_nodes,
                       offsets_1d, coeff, w_feat, w_gauss, bias_1d):
    diff = pos_nodes[bond_index[0]] - pos_nodes[bond_index[1]]
    dist = jnp.linalg.norm(diff, axis=-1)                            # [E]
    d = dist[:, None] - offsets_1d[None, :]
    gauss = jnp.exp(coeff * d * d)                                   # [E, num_gauss]
    x = jnp.concatenate([bond_feat, gauss], axis=-1)
    return x @ jnp.concatenate([w_feat, w_gauss], axis=0) + bias_1d[None, :]


if __name__ == "__main__":
    key = jax.random.PRNGKey(0)
    k1, k2, k3, k4, k5 = jax.random.split(key, 5)

    # Module hyperparameters
    in_dim = 8
    out_dim = 32
    cutoff = 5.0
    num_gauss = 20

    # Small problem; E not a multiple of 128 exercises the tail-padding path,
    # and the tiling logic yields 2 edge tiles (parallel grid axis).
    n_nodes = 64
    n_edges = 250

    bond_feat = jax.random.normal(k1, (n_edges, in_dim), dtype=jnp.float32)
    bond_index = jax.random.randint(k2, (2, n_edges), 0, n_nodes, dtype=jnp.int32)
    pos_nodes = jax.random.normal(k3, (n_nodes, 3), dtype=jnp.float32) * 3.0

    # GaussianSmearing parameters (start=0, stop=cutoff, num_gaussians=20)
    offsets_1d = jnp.linspace(0.0, cutoff, num_gauss, dtype=jnp.float32)
    step = float(offsets_1d[1] - offsets_1d[0])
    coeff = -0.5 / (step * step)

    # Linear(in_dim + 20, out_dim) parameters (PyTorch: y = x @ W.T + b).
    w_full = (jax.random.normal(k4, (out_dim, in_dim + num_gauss),
                                dtype=jnp.float32)
              * (1.0 / jnp.sqrt(in_dim + num_gauss)))
    bias_1d = jax.random.normal(k5, (out_dim,), dtype=jnp.float32) * 0.1
    w_feat = w_full[:, :in_dim].T          # [in_dim, out_dim]
    w_gauss = w_full[:, in_dim:].T         # [num_gauss, out_dim]

    out = bond_embedding(bond_feat, bond_index, pos_nodes,
                         offsets_1d, coeff, w_feat, w_gauss, bias_1d)
    out = jax.block_until_ready(out)

    ref = bond_embedding_ref(bond_feat, bond_index, pos_nodes,
                             offsets_1d, coeff, w_feat, w_gauss, bias_1d)

    assert out.shape == (n_edges, out_dim), out.shape
    assert jnp.allclose(out, ref, atol=1e-4, rtol=1e-4), \
        float(jnp.max(jnp.abs(out - ref)))
    print("KERNEL_OK")
</pallas_src>

<mosaic_0001>
module attributes {stable_mosaic.version = 11 : i64} {
  func.func @bond_embedding_kernel(%arg0: i32, %arg1: memref<1x1xf32, #tpu.memory_space<smem>>, %arg2: memref<1x128xf32, #tpu.memory_space<vmem>>, %arg3: memref<128x8xf32, #tpu.memory_space<vmem>>, %arg4: memref<20x1xf32, #tpu.memory_space<vmem>>, %arg5: memref<32x8xf32, #tpu.memory_space<vmem>>, %arg6: memref<32x20xf32, #tpu.memory_space<vmem>>, %arg7: memref<32x1xf32, #tpu.memory_space<vmem>>, %arg8: memref<128x32xf32, #tpu.memory_space<vmem>>) attributes {dimension_semantics = [#tpu.dimension_semantics<parallel>], iteration_bounds = array<i64: 2>, scalar_prefetch = 0 : i64, scratch_operands = 0 : i64, tpu.core_type = #tpu.core_type<tc>, window_params = [{transform_indices = @transform_0, window_bounds = array<i64: 1, 1>}, {transform_indices = @transform_1, window_bounds = array<i64: 1, 128>}, {transform_indices = @transform_2, window_bounds = array<i64: 128, 8>}, {pipeline_mode = #tpu.pipeline_mode<synchronous>, transform_indices = @transform_3, window_bounds = array<i64: 20, 1>}, {pipeline_mode = #tpu.pipeline_mode<synchronous>, transform_indices = @transform_4, window_bounds = array<i64: 32, 8>}, {pipeline_mode = #tpu.pipeline_mode<synchronous>, transform_indices = @transform_5, window_bounds = array<i64: 32, 20>}, {pipeline_mode = #tpu.pipeline_mode<synchronous>, transform_indices = @transform_6, window_bounds = array<i64: 32, 1>}, {transform_indices = @transform_7, window_bounds = array<i64: 128, 32>}]} {
    %c0 = arith.constant 0 : index
    %c0_0 = arith.constant 0 : index
    %0 = memref.load %arg1[%c0, %c0_0] : memref<1x1xf32, #tpu.memory_space<smem>>
    %c0_1 = arith.constant 0 : index
    %c0_2 = arith.constant 0 : index
    %1 = vector.load %arg2[%c0_1, %c0_2] : memref<1x128xf32, #tpu.memory_space<vmem>>, vector<1x128xf32>
    %c0_3 = arith.constant 0 : index
    %c0_4 = arith.constant 0 : index
    %2 = vector.load %arg4[%c0_3, %c0_4] : memref<20x1xf32, #tpu.memory_space<vmem>>, vector<20x1xf32>
    %3 = vector.broadcast %1 : vector<1x128xf32> to vector<20x128xf32>
    %4 = vector.broadcast %2 : vector<20x1xf32> to vector<20x128xf32>
    %5 = arith.subf %3, %4 : vector<20x128xf32>
    %6 = vector.broadcast %0 : f32 to vector<20x128xf32>
    %7 = arith.mulf %6, %5 : vector<20x128xf32>
    %8 = arith.mulf %7, %5 : vector<20x128xf32>
    %9 = math.exp %8 : vector<20x128xf32>
    %c0_5 = arith.constant 0 : index
    %c0_6 = arith.constant 0 : index
    %10 = vector.load %arg5[%c0_5, %c0_6] : memref<32x8xf32, #tpu.memory_space<vmem>>, vector<32x8xf32>
    %c0_7 = arith.constant 0 : index
    %c0_8 = arith.constant 0 : index
    %11 = vector.load %arg3[%c0_7, %c0_8] : memref<128x8xf32, #tpu.memory_space<vmem>>, vector<128x8xf32>
    %cst = arith.constant dense<0.000000e+00> : vector<32x128xf32>
    %12 = tpu.matmul %10, %11, %cst {dimension_numbers = #tpu.dot_dimension_numbers<[1], [1], [0], [0], [0, 0, 1, 0], [], []>} : vector<32x8xf32>, vector<128x8xf32>, vector<32x128xf32> -> vector<32x128xf32>
    %c0_9 = arith.constant 0 : index
    %c0_10 = arith.constant 0 : index
    %13 = vector.load %arg6[%c0_9, %c0_10] : memref<32x20xf32, #tpu.memory_space<vmem>>, vector<32x20xf32>
    %cst_11 = arith.constant dense<0.000000e+00> : vector<32x128xf32>
    %14 = tpu.matmul %13, %9, %cst_11 {dimension_numbers = #tpu.dot_dimension_numbers<[1], [0], [0], [1], [0, 0, 1, 1], [], []>} : vector<32x20xf32>, vector<20x128xf32>, vector<32x128xf32> -> vector<32x128xf32>
    %15 = arith.addf %12, %14 : vector<32x128xf32>
    %c0_12 = arith.constant 0 : index
    %c0_13 = arith.constant 0 : index
    %16 = vector.load %arg7[%c0_12, %c0_13] : memref<32x1xf32, #tpu.memory_space<vmem>>, vector<32x1xf32>
    %17 = vector.broadcast %16 : vector<32x1xf32> to vector<32x128xf32>
    %18 = arith.addf %15, %17 : vector<32x128xf32>
    %19 = tpu.transpose %18, [1, 0] : vector<32x128xf32> -> vector<128x32xf32>
    %c0_14 = arith.constant 0 : index
    %c0_15 = arith.constant 0 : index
    %20 = vector.load %arg8[%c0_14, %c0_15] : memref<128x32xf32, #tpu.memory_space<vmem>>, vector<128x32xf32>
    tpu.vector_store %arg8[%c0_14, %c0_15], %19 {strides = array<i32>} : memref<128x32xf32, #tpu.memory_space<vmem>>, vector<128x32xf32>,
    return
  }
  func.func @transform_0(%arg0: i32) -> (i32, i32) {
    %c0_i32 = arith.constant 0 : i32
    %c0_i32_0 = arith.constant 0 : i32
    %c0_i32_1 = arith.constant 0 : i32
    return %c0_i32, %c0_i32_0 : i32, i32
  }
  func.func @transform_1(%arg0: i32) -> (i32, i32) {
    %c0_i32 = arith.constant 0 : i32
    %c0_i32_0 = arith.constant 0 : i32
    return %c0_i32, %arg0 : i32, i32
  }
  func.func @transform_2(%arg0: i32) -> (i32, i32) {
    %c0_i32 = arith.constant 0 : i32
    %c0_i32_0 = arith.constant 0 : i32
    return %arg0, %c0_i32 : i32, i32
  }
  func.func @transform_3(%arg0: i32) -> (i32, i32) {
    %c0_i32 = arith.constant 0 : i32
    %c0_i32_0 = arith.constant 0 : i32
    %c0_i32_1 = arith.constant 0 : i32
    return %c0_i32, %c0_i32_0 : i32, i32
  }
  func.func @transform_4(%arg0: i32) -> (i32, i32) {
    %c0_i32 = arith.constant 0 : i32
    %c0_i32_0 = arith.constant 0 : i32
    %c0_i32_1 = arith.constant 0 : i32
    return %c0_i32, %c0_i32_0 : i32, i32
  }
  func.func @transform_5(%arg0: i32) -> (i32, i32) {
    %c0_i32 = arith.constant 0 : i32
    %c0_i32_0 = arith.constant 0 : i32
    %c0_i32_1 = arith.constant 0 : i32
    return %c0_i32, %c0_i32_0 : i32, i32
  }
  func.func @transform_6(%arg0: i32) -> (i32, i32) {
    %c0_i32 = arith.constant 0 : i32
    %c0_i32_0 = arith.constant 0 : i32
    %c0_i32_1 = arith.constant 0 : i32
    return %c0_i32, %c0_i32_0 : i32, i32
  }
  func.func @transform_7(%arg0: i32) -> (i32, i32) {
    %c0_i32 = arith.constant 0 : i32
    %c0_i32_0 = arith.constant 0 : i32
    return %arg0, %c0_i32 : i32, i32
  }
}

</mosaic_0001>

<llo_original>
// kernel: tpu_custom_call.1
$region0: #{tpu_custom_call.1}
  #allocation0 [shape = 'u32[]', space=smem, size = 0x4, offset = 0x4, fixed_abs, tag = 'smem constant byte address 0x4 - core index']
  #allocation1 [shape = 'u32[72,128]{1,0:T(1,128)}', space=vmem, size = 0x9000, scoped, tag = 'internal scratch']
  #allocation2 [shape = 'f32[1,1]{1,0:T(1,128)S(6)}', space=smem, size = 0x200, scoped, tag = 'scoped memory for tpu_custom_call.1']
  %s0 = inlined_call_operand.<no memory space> [shape: f32[1,1], index: 0, kind: input, shape index: {}]
  %s1 = inlined_call_operand.vmem [shape: f32[1,256], index: 1, kind: input, shape index: {}]
  %s2 = inlined_call_operand.vmem [shape: f32[256,8], index: 2, kind: input, shape index: {}]
  %s3 = inlined_call_operand.vmem [shape: f32[20,1], index: 3, kind: input, shape index: {}]
  %s4 = inlined_call_operand.vmem [shape: f32[32,8], index: 4, kind: input, shape index: {}]
  %s5 = inlined_call_operand.vmem [shape: f32[32,20], index: 5, kind: input, shape index: {}]
  %s6 = inlined_call_operand.vmem [shape: f32[32,1], index: 6, kind: input, shape index: {}]
  %s7 = inlined_call_operand.vmem [shape: f32[256,32], index: 7, kind: output, shape index: {}]
  %s8 = sld [smem:[#allocation0]]
  $region61: #{tpu_custom_call.1} parent=0
    _
  %s10 = ssub.s32 1, %s8
  %s11 = scalar_select 0, %s10, %s8
  %12 = sst [smem:[#allocation2]] %s0
  loop: start=0, step=1, limit=4
  $region2: #{tpu_custom_call.1} parent=0 // loop_pre_header
    _
  $region3: #{tpu_custom_call.1} parent=0 // loop_header
    %s14 = sphi 0, %s18
    %p15 = scmp.ge.s32.totalorder %s14, 4
    %s22 = sphi 0, %s22
    %s24 = sphi 0, %s22
    %s25 = sphi 0, %s24
    %s39 = sphi 0, %s25
    %s45 = sphi 0, %s47
    %s48 = sphi 0, %s45
    %s49 = sphi 0, %s48
    %s65 = sphi 0, %s49
    %s71 = sphi 0, %s73
    %s74 = sphi 0, %s71
    %s75 = sphi 0, %s74
    %s91 = sphi 0, %s75
    %s95 = sphi 0, %s95
    %s97 = sphi 0, %s95
    %s98 = sphi 0, %s97
    %s112 = sphi 0, %s98
    %s116 = sphi 0, %s116
    %s118 = sphi 0, %s116
    %s119 = sphi 0, %s118
    %s133 = sphi 0, %s119
    %s137 = sphi 0, %s137
    %s139 = sphi 0, %s137
    %s140 = sphi 0, %s139
    %s154 = sphi 0, %s140
    %s158 = sphi 0, %s158
    %s160 = sphi 0, %s158
    %s161 = sphi 0, %s160
    %s175 = sphi 0, %s161
    %s181 = sphi 0, %s183
    %s184 = sphi 0, %s181
    %s185 = sphi 0, %s184
    %s201 = sphi 0, %s185
  $region4: #{tpu_custom_call.1} parent=0 // loop_header_branch
    %17 = sbr.rel (%p15) target = $region8
  $region5: #{tpu_custom_call.1} parent=0 // loop_body
    %s19 = ssub.s32 %s14, 1
    %s20 = ssub.s32 %s14, 2
    %s21 = sadd.s32 %s14, 1
    %s23 = sadd.s32 %s22, 1
    %p26 = scmp.eq.s32.totalorder %s14, 1
    %p27 = scmp.ne.s32.totalorder %s22, %s24
    %p28 = scmp.eq.s32.totalorder %s14, 0
    %p29 = por %p27, %p28
    %p30 = scmp.ne.s32.totalorder %s22, %s24
    %p31 = scmp.eq.s32.totalorder %s19, 1
    %p32 = por %p30, %p31
    %p33 = scmp.ne.s32.totalorder %s24, %s25
    %p34 = scmp.eq.s32.totalorder %s19, 0
    %p35 = por %p33, %p34
    %p36 = scmp.ne.s32.totalorder %s24, %s25
    %p37 = scmp.eq.s32.totalorder %s20, 1
    %p38 = por %p36, %p37
    %p40 = scmp.ne.s32.totalorder %s25, %s39
    %p41 = scmp.eq.s32.totalorder %s20, 0
    %p42 = por %p40, %p41
    %s43 = ssub.s32 %s14, %s21
    %p44 = scmp.eq.s32.totalorder %s43, 0
    %s46 = sadd.s32 %s45, 1
    %s47 = scalar_select %p44, %s45, %s46
    %p50 = pneg %p44
    %p51 = scmp.eq.s32.totalorder %s14, 1
    %p52 = por %p50, %p51
    %p53 = scmp.ne.s32.totalorder %s45, %s48
    %p54 = scmp.eq.s32.totalorder %s14, 0
    %p55 = por %p53, %p54
    %p56 = scmp.ne.s32.totalorder %s45, %s48
    %p57 = scmp.eq.s32.totalorder %s19, 1
    %p58 = por %p56, %p57
    %p59 = scmp.ne.s32.totalorder %s48, %s49
    %p60 = scmp.eq.s32.totalorder %s19, 0
    %p61 = por %p59, %p60
    %p62 = scmp.ne.s32.totalorder %s48, %s49
    %p63 = scmp.eq.s32.totalorder %s20, 1
    %p64 = por %p62, %p63
    %p66 = scmp.ne.s32.totalorder %s49, %s65
    %p67 = scmp.eq.s32.totalorder %s20, 0
    %p68 = por %p66, %p67
    %s69 = ssub.s32 %s14, %s21
    %p70 = scmp.eq.s32.totalorder %s69, 0
    %s72 = sadd.s32 %s71, 1
    %s73 = scalar_select %p70, %s71, %s72
    %p76 = pneg %p70
    %p77 = scmp.eq.s32.totalorder %s14, 1
    %p78 = por %p76, %p77
    %p79 = scmp.ne.s32.totalorder %s71, %s74
    %p80 = scmp.eq.s32.totalorder %s14, 0
    %p81 = por %p79, %p80
    %p82 = scmp.ne.s32.totalorder %s71, %s74
    %p83 = scmp.eq.s32.totalorder %s19, 1
    %p84 = por %p82, %p83
    %p85 = scmp.ne.s32.totalorder %s74, %s75
    %p86 = scmp.eq.s32.totalorder %s19, 0
    %p87 = por %p85, %p86
    %p88 = scmp.ne.s32.totalorder %s74, %s75
    %p89 = scmp.eq.s32.totalorder %s20, 1
    %p90 = por %p88, %p89
    %p92 = scmp.ne.s32.totalorder %s75, %s91
    %p93 = scmp.eq.s32.totalorder %s20, 0
    %p94 = por %p92, %p93
    %s96 = sadd.s32 %s95, 1
    %p99 = scmp.eq.s32.totalorder %s14, 1
    %p100 = scmp.ne.s32.totalorder %s95, %s97
    %p101 = scmp.eq.s32.totalorder %s14, 0
    %p102 = por %p100, %p101
    %p103 = scmp.ne.s32.totalorder %s95, %s97
    %p104 = scmp.eq.s32.totalorder %s19, 1
    %p105 = por %p103, %p104
    %p106 = scmp.ne.s32.totalorder %s97, %s98
    %p107 = scmp.eq.s32.totalorder %s19, 0
    %p108 = por %p106, %p107
    %p109 = scmp.ne.s32.totalorder %s97, %s98
    %p110 = scmp.eq.s32.totalorder %s20, 1
    %p111 = por %p109, %p110
    %p113 = scmp.ne.s32.totalorder %s98, %s112
    %p114 = scmp.eq.s32.totalorder %s20, 0
    %p115 = por %p113, %p114
    %s117 = sadd.s32 %s116, 1
    %p120 = scmp.eq.s32.totalorder %s14, 1
    %p121 = scmp.ne.s32.totalorder %s116, %s118
    %p122 = scmp.eq.s32.totalorder %s14, 0
    %p123 = por %p121, %p122
    %p124 = scmp.ne.s32.totalorder %s116, %s118
    %p125 = scmp.eq.s32.totalorder %s19, 1
    %p126 = por %p124, %p125
    %p127 = scmp.ne.s32.totalorder %s118, %s119
    %p128 = scmp.eq.s32.totalorder %s19, 0
    %p129 = por %p127, %p128
    %p130 = scmp.ne.s32.totalorder %s118, %s119
    %p131 = scmp.eq.s32.totalorder %s20, 1
    %p132 = por %p130, %p131
    %p134 = scmp.ne.s32.totalorder %s119, %s133
    %p135 = scmp.eq.s32.totalorder %s20, 0
    %p136 = por %p134, %p135
    %s138 = sadd.s32 %s137, 1
    %p141 = scmp.eq.s32.totalorder %s14, 1
    %p142 = scmp.ne.s32.totalorder %s137, %s139
    %p143 = scmp.eq.s32.totalorder %s14, 0
    %p144 = por %p142, %p143
    %p145 = scmp.ne.s32.totalorder %s137, %s139
    %p146 = scmp.eq.s32.totalorder %s19, 1
    %p147 = por %p145, %p146
    %p148 = scmp.ne.s32.totalorder %s139, %s140
    %p149 = scmp.eq.s32.totalorder %s19, 0
    %p150 = por %p148, %p149
    %p151 = scmp.ne.s32.totalorder %s139, %s140
    %p152 = scmp.eq.s32.totalorder %s20, 1
    %p153 = por %p151, %p152
    %p155 = scmp.ne.s32.totalorder %s140, %s154
    %p156 = scmp.eq.s32.totalorder %s20, 0
    %p157 = por %p155, %p156
    %s159 = sadd.s32 %s158, 1
    %p162 = scmp.eq.s32.totalorder %s14, 1
    %p163 = scmp.ne.s32.totalorder %s158, %s160
    %p164 = scmp.eq.s32.totalorder %s14, 0
    %p165 = por %p163, %p164
    %p166 = scmp.ne.s32.totalorder %s158, %s160
    %p167 = scmp.eq.s32.totalorder %s19, 1
    %p168 = por %p166, %p167
    %p169 = scmp.ne.s32.totalorder %s160, %s161
    %p170 = scmp.eq.s32.totalorder %s19, 0
    %p171 = por %p169, %p170
    %p172 = scmp.ne.s32.totalorder %s160, %s161
    %p173 = scmp.eq.s32.totalorder %s20, 1
    %p174 = por %p172, %p173
    %p176 = scmp.ne.s32.totalorder %s161, %s175
    %p177 = scmp.eq.s32.totalorder %s20, 0
    %p178 = por %p176, %p177
    %s179 = ssub.s32 %s14, %s21
    %p180 = scmp.eq.s32.totalorder %s179, 0
    %s182 = sadd.s32 %s181, 1
    %s183 = scalar_select %p180, %s181, %s182
    %p186 = pneg %p180
    %p187 = scmp.eq.s32.totalorder %s14, 1
    %p188 = por %p186, %p187
    %p189 = scmp.ne.s32.totalorder %s181, %s184
    %p190 = scmp.eq.s32.totalorder %s14, 0
    %p191 = por %p189, %p190
    %p192 = scmp.ne.s32.totalorder %s181, %s184
    %p193 = scmp.eq.s32.totalorder %s19, 1
    %p194 = por %p192, %p193
    %p195 = scmp.ne.s32.totalorder %s184, %s185
    %p196 = scmp.eq.s32.totalorder %s19, 0
    %p197 = por %p195, %p196
    %p198 = scmp.ne.s32.totalorder %s184, %s185
    %p199 = scmp.eq.s32.totalorder %s20, 1
    %p200 = por %p198, %p199
    %p202 = scmp.ne.s32.totalorder %s185, %s201
    %p203 = scmp.eq.s32.totalorder %s20, 0
    %p204 = por %p202, %p203
    %p205 = scmp.le.s32.totalorder 1, %s14
    %p206 = scmp.lt.s32.totalorder %s14, 3
    %p207 = pnand %p205, %p206
    %p208 = pneg %p207
    // Predicated region
    $region9: #{tpu_custom_call.1} parent=5 // pred_check
      _
    $region10: #{tpu_custom_call.1} parent=5 // pred_check_branch
      %210 = sbr.rel (%p207) target = $region12
    $region11: #{tpu_custom_call.1} parent=5 // pred_region
      %s211 = ssub.s32 %s14, 1
      // Predicated region
      $region13: #{tpu_custom_call.1} parent=11 // pred_check
        %p212 = pneg %p35
      $region14: #{tpu_custom_call.1} parent=11 // pred_check_branch
        %214 = sbr.rel (%p212) target = $region16
      $region15: #{tpu_custom_call.1} parent=11 // pred_region
        _
      $region16: #{tpu_custom_call.1} parent=11 // pred_fallthru
        _
      // Predicated region
      $region17: #{tpu_custom_call.1} parent=11 // pred_check
        %p215 = pneg %p108
      $region18: #{tpu_custom_call.1} parent=11 // pred_check_branch
        %217 = sbr.rel (%p215) target = $region20
      $region19: #{tpu_custom_call.1} parent=11 // pred_region
        _
      $region20: #{tpu_custom_call.1} parent=11 // pred_fallthru
        _
      // Predicated region
      $region21: #{tpu_custom_call.1} parent=11 // pred_check
        %p218 = pneg %p129
      $region22: #{tpu_custom_call.1} parent=11 // pred_check_branch
        %220 = sbr.rel (%p218) target = $region24
      $region23: #{tpu_custom_call.1} parent=11 // pred_region
        _
      $region24: #{tpu_custom_call.1} parent=11 // pred_fallthru
        _
      // Predicated region
      $region25: #{tpu_custom_call.1} parent=11 // pred_check
        %p221 = pneg %p150
      $region26: #{tpu_custom_call.1} parent=11 // pred_check_branch
        %223 = sbr.rel (%p221) target = $region28
      $region27: #{tpu_custom_call.1} parent=11 // pred_region
        _
      $region28: #{tpu_custom_call.1} parent=11 // pred_fallthru
        _
      // Predicated region
      $region29: #{tpu_custom_call.1} parent=11 // pred_check
        %p224 = pneg %p171
      $region30: #{tpu_custom_call.1} parent=11 // pred_check_branch
        %226 = sbr.rel (%p224) target = $region32
      $region31: #{tpu_custom_call.1} parent=11 // pred_region
        _
      $region32: #{tpu_custom_call.1} parent=11 // pred_fallthru
        _
    $region12: #{tpu_custom_call.1} parent=5 // pred_fallthru
      _
    %p227 = scmp.lt.s32.totalorder %s14, 2
    // Predicated region
    $region33: #{tpu_custom_call.1} parent=5 // pred_check
      %p228 = pneg %p227
    $region34: #{tpu_custom_call.1} parent=5 // pred_check_branch
      %230 = sbr.rel (%p228) target = $region36
    $region35: #{tpu_custom_call.1} parent=5 // pred_region
      // Predicated region
      $region37: #{tpu_custom_call.1} parent=35 // pred_check
        %p231 = pneg %p55
      $region38: #{tpu_custom_call.1} parent=35 // pred_check_branch
        %233 = sbr.rel (%p231) target = $region40
      $region39: #{tpu_custom_call.1} parent=35 // pred_region
        %p234 = scmp.lt.s32.totalorder %s14, 1
        %s235 = scalar_select %p234, %s14, 1
        %s236 = scalar_lea.vmem %s1, %s235
      $region40: #{tpu_custom_call.1} parent=35 // pred_fallthru
        _
      // Predicated region
      $region41: #{tpu_custom_call.1} parent=35 // pred_check
        %p237 = pneg %p81
      $region42: #{tpu_custom_call.1} parent=35 // pred_check_branch
        %239 = sbr.rel (%p237) target = $region44
      $region43: #{tpu_custom_call.1} parent=35 // pred_region
        %s240 = smul.u32 16, %s14
        %p241 = scmp.lt.s32.totalorder %s240, 31
        %s242 = scalar_select %p241, %s240, 31
        %s243 = smul.addr %s242, 8
        %s244 = scalar_lea.vmem %s2, %s243
        %s245 = smul.u32 16, %s14
      $region44: #{tpu_custom_call.1} parent=35 // pred_fallthru
        _
    $region36: #{tpu_custom_call.1} parent=5 // pred_fallthru
      _
    %p246 = scmp.le.s32.totalorder 1, %s14
    %p247 = scmp.lt.s32.totalorder %s14, 3
    %p248 = pnand %p246, %p247
    %p249 = pneg %p248
    // Predicated region
    $region45: #{tpu_custom_call.1} parent=5 // pred_check
      _
    $region46: #{tpu_custom_call.1} parent=5 // pred_check_branch
      %251 = sbr.rel (%p248) target = $region48
    $region47: #{tpu_custom_call.1} parent=5 // pred_region
      %s252 = ssub.s32 %s14, 1
      %p253 = pneg %p35
      %p254 = pneg %p32
      %p255 = scmp.lt.s32.totalorder %s19, 1
      %s256 = scalar_select %p255, %s19, 1
      %s257 = scalar_lea.vmem %s1, %s256
      %p258 = pneg %p61
      %p259 = pneg %p58
      %s260 = smul.u32 16, %s19
      %p261 = scmp.lt.s32.totalorder %s260, 31
      %s262 = scalar_select %p261, %s260, 31
      %s263 = smul.addr %s262, 8
      %s264 = scalar_lea.vmem %s2, %s263
      %p265 = pneg %p87
      %p266 = pneg %p84
      %p267 = pneg %p108
      %p268 = pneg %p105
      %p269 = pneg %p129
      %p270 = pneg %p126
      %p271 = pneg %p150
      %p272 = pneg %p147
      %p273 = pneg %p171
      %p274 = pneg %p168
      %p275 = pneg %p197
      %p276 = pneg %p194
      %s277 = smul.u32 16, %s19
      %p278 = scmp.lt.s32.totalorder %s277, 31
      %s279 = scalar_select %p278, %s277, 31
      %s280 = smul.addr %s279, 8
      %s281 = scalar_lea.vmem %s7, %s280
      %p282 = scmp.lt.s32.totalorder %s19, 1
      %s283 = scalar_select %p282, %s19, 1
      %s284 = scalar_lea.vmem %s1, %s283
      %s285 = smul.u32 16, %s19
      %p286 = scmp.lt.s32.totalorder %s285, 31
      %s287 = scalar_select %p286, %s285, 31
      %s288 = smul.addr %s287, 8
      %s289 = scalar_lea.vmem %s2, %s288
      %s290 = smul.u32 16, %s19
      %s291 = smul.u32 16, %s19
      %p292 = scmp.lt.s32.totalorder %s291, 31
      %s293 = scalar_select %p292, %s291, 31
      %s294 = smul.addr %s293, 8
      %s295 = scalar_lea.vmem %s7, %s294
      %s296 = smul.u32 16, %s19
      %s297 = sld [smem:[#allocation2]]
      %v298 = vld [vmem:[%s284] sm:$0x1]
      %v299 = vld [vmem:[%s3] sm:$0xff]
      %v300 = vld [vmem:[%s3 + $0x8] sm:$0xff]
      %v301 = vld [vmem:[%s3 + $0x10] sm:$0xf]
      %v303 = vperm.slane %v298, 0
      %306 = vset.pattern.permute.xlu0 0
      %307 = vperm.xlu0 %306, %v299
      %v308 = vpop.permute.xlu0 %307
      %311 = vset.pattern.permute.xlu0 0
      %312 = vperm.xlu0 %311, %v300
      %v313 = vpop.permute.xlu0 %312
      %316 = vset.pattern.permute.xlu0 0
      %317 = vperm.xlu0 %316, %v301
      %v318 = vpop.permute.xlu0 %317
      %v320 = vsub.f32 %v303, %v308
      %v321 = vsub.f32 %v303, %v313
      %v322 = vsub.f32 %v303, %v318
      %v323 = vstv %s297
      %v324 = vmul.f32 %v323, %v320
      %v325 = vmul.f32 %v323, %v321
      %v326 = vmul.f32 %v323, %v322
      %v327 = vmul.f32 %v324, %v320
      %v328 = vmul.f32 %v325, %v321
      %v329 = vmul.f32 %v326, %v322
      %v330 = vmul.f32 %v327, 1.442695
      %v331 = vpow.pop %v330
      %v332 = vmul.f32 %v328, 1.442695
      %v333 = vpow.pop %v332
      %v334 = vmul.f32 %v329, 1.442695
      %v335 = vpow.pop %v334
      %v336 = vld [vmem:[%s4] sm:$0xff]
      %v337 = vld [vmem:[%s4 + $0x8] sm:$0xff]
      %v338 = vld [vmem:[%s4 + $0x10] sm:$0xff]
      %v339 = vld [vmem:[%s4 + $0x18] sm:$0xff]
      %v340 = vld [vmem:[%s289] sm:$0xff]
      %v341 = vld [vmem:[%s289 + $0x8] sm:$0xff]
      %v342 = vld [vmem:[%s289 + $0x10] sm:$0xff]
      %v343 = vld [vmem:[%s289 + $0x18] sm:$0xff]
      %v344 = vld [vmem:[%s289 + $0x20] sm:$0xff]
      %v345 = vld [vmem:[%s289 + $0x28] sm:$0xff]
      %v346 = vld [vmem:[%s289 + $0x30] sm:$0xff]
      %v347 = vld [vmem:[%s289 + $0x38] sm:$0xff]
      %v348 = vld [vmem:[%s289 + $0x40] sm:$0xff]
      %v349 = vld [vmem:[%s289 + $0x48] sm:$0xff]
      %v350 = vld [vmem:[%s289 + $0x50] sm:$0xff]
      %v351 = vld [vmem:[%s289 + $0x58] sm:$0xff]
      %v352 = vld [vmem:[%s289 + $0x60] sm:$0xff]
      %v353 = vld [vmem:[%s289 + $0x68] sm:$0xff]
      %v354 = vld [vmem:[%s289 + $0x70] sm:$0xff]
      %v355 = vld [vmem:[%s289 + $0x78] sm:$0xff]
      %v356 = vld [vmem:[%s5] sm:$0xff]
      %v357 = vld [vmem:[%s5 + $0x8] sm:$0xff]
      %v358 = vld [vmem:[%s5 + $0x10] sm:$0xff]
      %v359 = vld [vmem:[%s5 + $0x18] sm:$0xff]
      %vm360 = vcmask 162816
      %v362 = vsel %vm360, %v356, 0
      %v365 = vsel %vm360, %v357, 0
      %v368 = vsel %vm360, %v358, 0
      %v371 = vsel %vm360, %v359, 0
      %vm373 = vcmask 1043456
      %v375 = vsel %vm373, %v335, 0
      %377 = vmatpush.msra.mxu0 0.0
      %378 = vmatpush.msra.mxu0 0.0
      %379 = vmatpush.msra.mxu0 0.0
      %380 = vmatpush.msra.mxu0 0.0
      %381 = vmatpush.msra.mxu0 0.0
      %382 = vmatpush.msra.mxu0 0.0
      %383 = vmatpush.msra.mxu0 0.0
      %384 = vmatpush.msra.mxu0 0.0
      %385 = vmatpush.msra.mxu0 0.0
      %386 = vmatpush.msra.mxu0 0.0
      %387 = vmatpush.msra.mxu0 0.0
      %388 = vmatpush.msra.mxu0 0.0
      %389 = vmatpush.msra.mxu0 0.0
      %390 = vmatpush.msra.mxu0 %v375
      %391 = vmatpush.msra.mxu0 %v333
      %392 = vmatpush.msra.mxu0 %v331
      %393 = vmatmul.f32.gmra.mxu0 %v362
      %v394 = vpop.f32.mrf.mxu0
      %v395 = vadd.f32 0.0, %v394
      %396 = vmatmul.f32.gmra.mxu0 %v365
      %v397 = vpop.f32.mrf.mxu0
      %v398 = vadd.f32 0.0, %v397
      %399 = vmatmul.f32.gmra.mxu0 %v368
      %v400 = vpop.f32.mrf.mxu0
      %v401 = vadd.f32 0.0, %v400
      %402 = vmatmul.f32.gmra.mxu0 %v371
      %v403 = vpop.f32.mrf.mxu0
      %v404 = vadd.f32 0.0, %v403
      %405 = vdwg.mxu0
      %vm406 = vcmask 64512
      %v408 = vsel %vm406, %v336, 0
      %v411 = vsel %vm406, %v337, 0
      %v414 = vsel %vm406, %v338, 0
      %v417 = vsel %vm406, %v339, 0
      %v420 = vsel %vm406, %v340, 0
      %v423 = vsel %vm406, %v341, 0
      %v426 = vsel %vm406, %v342, 0
      %v429 = vsel %vm406, %v343, 0
      %v432 = vsel %vm406, %v344, 0
      %v435 = vsel %vm406, %v345, 0
      %v438 = vsel %vm406, %v346, 0
      %v441 = vsel %vm406, %v347, 0
      %v444 = vsel %vm406, %v348, 0
      %v447 = vsel %vm406, %v349, 0
      %v450 = vsel %vm406, %v350, 0
      %v453 = vsel %vm406, %v351, 0
      %v456 = vsel %vm406, %v352, 0
      %v459 = vsel %vm406, %v353, 0
      %v462 = vsel %vm406, %v354, 0
      %v465 = vsel %vm406, %v355, 0
      %467 = vmatpush.xpose.msra.mxu0 %v465
      %468 = vmatpush.xpose.msra.mxu0 %v462
      %469 = vmatpush.xpose.msra.mxu0 %v459
      %470 = vmatpush.xpose.msra.mxu0 %v456
      %471 = vmatpush.xpose.msra.mxu0 %v453
      %472 = vmatpush.xpose.msra.mxu0 %v450
      %473 = vmatpush.xpose.msra.mxu0 %v447
      %474 = vmatpush.xpose.msra.mxu0 %v444
      %475 = vmatpush.xpose.msra.mxu0 %v441
      %476 = vmatpush.xpose.msra.mxu0 %v438
      %477 = vmatpush.xpose.msra.mxu0 %v435
      %478 = vmatpush.xpose.msra.mxu0 %v432
      %479 = vmatpush.xpose.msra.mxu0 %v429
      %480 = vmatpush.xpose.msra.mxu0 %v426
      %481 = vmatpush.xpose.msra.mxu0 %v423
      %482 = vmatpush.xpose.msra.mxu0 %v420
      %483 = vmatmul.f32.gmra.mxu0 %v408
      %v484 = vpop.f32.mrf.mxu0
      %v485 = vadd.f32 %v395, %v484
      %486 = vmatmul.f32.gmra.mxu0 %v411
      %v487 = vpop.f32.mrf.mxu0
      %v488 = vadd.f32 %v398, %v487
      %489 = vmatmul.f32.gmra.mxu0 %v414
      %v490 = vpop.f32.mrf.mxu0
      %v491 = vadd.f32 %v401, %v490
      %492 = vmatmul.f32.gmra.mxu0 %v417
      %v493 = vpop.f32.mrf.mxu0
      %v494 = vadd.f32 %v404, %v493
      %495 = vdwg.mxu0
      %v496 = vld [vmem:[%s6] sm:$0xff]
      %v497 = vld [vmem:[%s6 + $0x8] sm:$0xff]
      %v498 = vld [vmem:[%s6 + $0x10] sm:$0xff]
      %v499 = vld [vmem:[%s6 + $0x18] sm:$0xff]
      %501 = vset.pattern.permute.xlu0 0
      %502 = vperm.xlu0 %501, %v496
      %v503 = vpop.permute.xlu0 %502
      %506 = vset.pattern.permute.xlu0 0
      %507 = vperm.xlu0 %506, %v497
      %v508 = vpop.permute.xlu0 %507
      %511 = vset.pattern.permute.xlu0 0
      %512 = vperm.xlu0 %511, %v498
      %v513 = vpop.permute.xlu0 %512
      %516 = vset.pattern.permute.xlu0 0
      %517 = vperm.xlu0 %516, %v499
      %v518 = vpop.permute.xlu0 %517
      %v520 = vadd.f32 %v485, %v503
      %v521 = vadd.f32 %v488, %v508
      %v522 = vadd.f32 %v491, %v513
      %v523 = vadd.f32 %v494, %v518
      %524 = vxpose.xlu0.b32.start [1/16] %v520, 128
      %525 = vxpose.xlu0.b32.cont [2/16] %v521, 128
      %526 = vxpose.xlu0.b32.cont [3/16] %v522, 128
      %527 = vxpose.xlu0.b32.cont [4/16] %v523, 128
      %528 = vxpose.xlu0.b32.cont [5/16] 0.0, 128
      %529 = vxpose.xlu0.b32.cont [6/16] 0.0, 128
      %530 = vxpose.xlu0.b32.cont [7/16] 0.0, 128
      %531 = vxpose.xlu0.b32.cont [8/16] 0.0, 128
      %532 = vxpose.xlu0.b32.cont [9/16] 0.0, 128
      %533 = vxpose.xlu0.b32.cont [10/16] 0.0, 128
      %534 = vxpose.xlu0.b32.cont [11/16] 0.0, 128
      %535 = vxpose.xlu0.b32.cont [12/16] 0.0, 128
      %536 = vxpose.xlu0.b32.cont [13/16] 0.0, 128
      %537 = vxpose.xlu0.b32.cont [14/16] 0.0, 128
      %538 = vxpose.xlu0.b32.cont [15/16] 0.0, 128
      %539 = vxpose.xlu0.b32.end [16/16] 0.0, 128
      %v540 = vpop.trf.xlu0
      %v541 = vpop.trf.xlu0
      %v542 = vpop.trf.xlu0
      %v543 = vpop.trf.xlu0
      %v544 = vpop.trf.xlu0
      %v545 = vpop.trf.xlu0
      %v546 = vpop.trf.xlu0
      %v547 = vpop.trf.xlu0
      %v548 = vpop.trf.xlu0
      %v549 = vpop.trf.xlu0
      %v550 = vpop.trf.xlu0
      %v551 = vpop.trf.xlu0
      %v552 = vpop.trf.xlu0
      %v553 = vpop.trf.xlu0
      %v554 = vpop.trf.xlu0
      %v555 = vpop.trf.xlu0
      %vm556 = vcmask 261120
      %557 = vst.msk [vmem:[%s295] sm:$0xff] %vm556, %v540
      %558 = vst.msk [vmem:[%s295 + $0x8] sm:$0xff] %vm556, %v541
      %559 = vst.msk [vmem:[%s295 + $0x10] sm:$0xff] %vm556, %v542
      %560 = vst.msk [vmem:[%s295 + $0x18] sm:$0xff] %vm556, %v543
      %561 = vst.msk [vmem:[%s295 + $0x20] sm:$0xff] %vm556, %v544
      %562 = vst.msk [vmem:[%s295 + $0x28] sm:$0xff] %vm556, %v545
      %563 = vst.msk [vmem:[%s295 + $0x30] sm:$0xff] %vm556, %v546
      %564 = vst.msk [vmem:[%s295 + $0x38] sm:$0xff] %vm556, %v547
      %565 = vst.msk [vmem:[%s295 + $0x40] sm:$0xff] %vm556, %v548
      %566 = vst.msk [vmem:[%s295 + $0x48] sm:$0xff] %vm556, %v549
      %567 = vst.msk [vmem:[%s295 + $0x50] sm:$0xff] %vm556, %v550
      %568 = vst.msk [vmem:[%s295 + $0x58] sm:$0xff] %vm556, %v551
      %569 = vst.msk [vmem:[%s295 + $0x60] sm:$0xff] %vm556, %v552
      %570 = vst.msk [vmem:[%s295 + $0x68] sm:$0xff] %vm556, %v553
      %571 = vst.msk [vmem:[%s295 + $0x70] sm:$0xff] %vm556, %v554
      %572 = vst.msk [vmem:[%s295 + $0x78] sm:$0xff] %vm556, %v555
      %s573 = smul.u32 16, %s19
      %p574 = scmp.lt.s32.totalorder %s573, 31
      %s575 = scalar_select %p574, %s573, 31
      %s576 = smul.addr %s575, 8
      %s577 = scalar_lea.vmem %s7, %s576
      // Predicated region
      $region49: #{tpu_custom_call.1} parent=47 // pred_check
        %p578 = pneg %p194
      $region50: #{tpu_custom_call.1} parent=47 // pred_check_branch
        %580 = sbr.rel (%p578) target = $region52
      $region51: #{tpu_custom_call.1} parent=47 // pred_region
        %s581 = smul.u32 16, %s19
      $region52: #{tpu_custom_call.1} parent=47 // pred_fallthru
        _
    $region48: #{tpu_custom_call.1} parent=5 // pred_fallthru
      _
    %p582 = scmp.le.s32.totalorder 2, %s14
    // Predicated region
    $region53: #{tpu_custom_call.1} parent=5 // pred_check
      %p583 = pneg %p582
    $region54: #{tpu_custom_call.1} parent=5 // pred_check_branch
      %585 = sbr.rel (%p583) target = $region56
    $region55: #{tpu_custom_call.1} parent=5 // pred_region
      %s586 = ssub.s32 %s14, 2
      // Predicated region
      $region57: #{tpu_custom_call.1} parent=55 // pred_check
        %p587 = pneg %p200
      $region58: #{tpu_custom_call.1} parent=55 // pred_check_branch
        %589 = sbr.rel (%p587) target = $region60
      $region59: #{tpu_custom_call.1} parent=55 // pred_region
        %s590 = smul.u32 16, %s20
        %p591 = scmp.lt.s32.totalorder %s590, 31
        %s592 = scalar_select %p591, %s590, 31
        %s593 = smul.addr %s592, 8
        %s594 = scalar_lea.vmem %s7, %s593
      $region60: #{tpu_custom_call.1} parent=55 // pred_fallthru
        _
    $region56: #{tpu_custom_call.1} parent=5 // pred_fallthru
      _
  $region6: #{tpu_custom_call.1} parent=0 // loop_footer
    %s18 = sadd.s32 1, %s14
  $region7: #{tpu_custom_call.1} parent=0 // loop_footer_branch
    %13 = sbr.rel target = $region3
  $region8: #{tpu_custom_call.1} parent=0 // loop_exit
    _

</llo_original>
